<compile_context>
chip_gen: v7x
topology: tpu7x:2x2x1
jax: 0.10.0
libtpu: 0.0.40
codegen_flags: <defaults>
</compile_context>

<pallas_src>
import functools

import jax
import jax.numpy as jnp
from jax import lax
from jax.experimental import pallas as pl
from jax.experimental.pallas import tpu as pltpu

_MIB = 1024 * 1024
_LANE_CAP = 32768          # max lane tile width -> (3, 8, tile_d) f32 acc stays <= 3 MiB
_MAX_ROW_TILE = 256        # keeps the row-group loop fully unrollable


def _round_up(x, m):
    return -(-x // m) * m


def _round_down(x, m):
    return (x // m) * m


def _pick_tile(dim, align, cap):
    """Largest multiple-of-`align` divisor of `dim` that is <= cap (None if none)."""
    hi = min(cap, dim)
    hi -= hi % align
    for t in range(hi, 0, -align):
        if dim % t == 0:
            return t
    return None


def _hw_budget():
    """(per-input block bytes, scoped VMEM limit) tuned per TPU generation."""
    vmem_cap = None
    try:
        info = pltpu.get_tpu_info()
        vmem_cap = getattr(info, "vmem_capacity_bytes", None)
    except Exception:
        vmem_cap = None
    if vmem_cap is not None and vmem_cap >= 128 * _MIB:   # v5e / v6e (128 MiB VMEM)
        return 8 * _MIB, 64 * _MIB
    return 4 * _MIB, 32 * _MIB                            # v7x (64 MiB VMEM) / unknown


def _d_tiling(d, lane_budget):
    """Lane tile; never pads in HBM (ragged tails handled by an in-kernel mask)."""
    if d <= lane_budget:
        return d, 1
    return lane_budget, -(-d // lane_budget)


def _split_d(g0, nb):
    """Guarantee >=2 steps on the leading parallel axis (v7x megacore) when possible."""
    nsplit = 2 if (g0 == 1 and nb >= 2) else 1
    gd = -(-nb // nsplit)
    clamp = nsplit * gd > nb        # some (split, j) pairs map past the last D block
    return nsplit, gd, clamp


# --------------------------------------------------------------------------- kernels


def _dice_dense_kernel(p_ref, t_ref, m_ref, out_ref, acc_ref, *,
                       d_total, tile_d, gd, needs_mask, groups, rem, cast_t):
    s = pl.program_id(0)            # parallel D split
    j = pl.program_id(2)            # reduction steps along D ("arbitrary", innermost)

    @pl.when(j == 0)
    def _():
        acc_ref[...] = jnp.zeros_like(acc_ref)

    if needs_mask:
        limit = d_total - (s * gd + j) * tile_d
        lane_ok = lax.broadcasted_iota(jnp.int32, (1, tile_d), 1) < limit
    else:
        lane_ok = None

    def products(p_raw, t_raw, m):
        p = p_raw.astype(jnp.float32)
        t = t_raw
        if cast_t:
            t = t.astype(jnp.int32)          # PyTorch .long() truncation, fused in-kernel
        t = t.astype(jnp.float32)
        if lane_ok is not None:              # ragged-D tail / OOB block -> exact zeros
            p = jnp.where(lane_ok, p, 0.0)
            t = jnp.where(lane_ok, t, 0.0)
        p = p * m                            # per (batch, channel) ignore_index mask
        t = t * m
        return p * t, p * p, t * t

    if groups > 0:
        def body(g, carry):
            r0 = pl.multiple_of(g * 8, 8)
            pt, pp, tt = products(p_ref[pl.ds(r0, 8), :],
                                  t_ref[pl.ds(r0, 8), :],
                                  m_ref[pl.ds(r0, 8), :])
            acc_ref[0] += pt
            acc_ref[1] += pp
            acc_ref[2] += tt
            return carry
        lax.fori_loop(0, groups, body, 0, unroll=True if groups <= 32 else 8)

    if rem > 0:
        lo = groups * 8
        pt, pp, tt = products(p_ref[lo:lo + rem, :],
                              t_ref[lo:lo + rem, :],
                              m_ref[lo:lo + rem, :])
        acc_ref[0, 0:1] += jnp.sum(pt, axis=0, keepdims=True)
        acc_ref[1, 0:1] += jnp.sum(pp, axis=0, keepdims=True)
        acc_ref[2, 0:1] += jnp.sum(tt, axis=0, keepdims=True)

    @pl.when(j == pl.num_programs(2) - 1)
    def _():
        out_ref[0, 0] = jnp.sum(acc_ref[...], axis=1)     # lane-dense (3, tile_d) partial


def _dice_label_kernel(p_ref, lab_ref, ids_ref, sel_ref, out_ref, acc_ref, *,
                       d_total, tile_d, gd, needs_mask, groups, rem):
    s = pl.program_id(0)
    j = pl.program_id(2)

    @pl.when(j == 0)
    def _():
        acc_ref[...] = jnp.zeros_like(acc_ref)

    if needs_mask:
        limit = d_total - (s * gd + j) * tile_d
        lane_ok = lax.broadcasted_iota(jnp.int32, (1, tile_d), 1) < limit
    else:
        lane_ok = None

    lab = lab_ref[0]                                      # (1, tile_d) int32

    def products(p_raw, ids, sel):
        p = p_raw.astype(jnp.float32)
        t = (lab == ids).astype(jnp.float32) * sel        # fused one-hot + ignore mask
        if lane_ok is not None:
            p = jnp.where(lane_ok, p, 0.0)
            t = jnp.where(lane_ok, t, 0.0)
        p = p * sel
        return p * t, p * p, t                            # t in {0,1}: t*t == t

    if groups > 0:
        def body(g, carry):
            c0 = pl.multiple_of(g * 8, 8)
            pt, pp, tt = products(p_ref[0, pl.ds(c0, 8), :],
                                  ids_ref[pl.ds(c0, 8), :],
                                  sel_ref[pl.ds(c0, 8), :])
            acc_ref[0] += pt
            acc_ref[1] += pp
            acc_ref[2] += tt
            return carry
        lax.fori_loop(0, groups, body, 0, unroll=True if groups <= 32 else 8)

    if rem > 0:
        lo = groups * 8
        pt, pp, tt = products(p_ref[0, lo:lo + rem, :],
                              ids_ref[lo:lo + rem, :],
                              sel_ref[lo:lo + rem, :])
        acc_ref[0, 0:1] += jnp.sum(pt, axis=0, keepdims=True)
        acc_ref[1, 0:1] += jnp.sum(pp, axis=0, keepdims=True)
        acc_ref[2, 0:1] += jnp.sum(tt, axis=0, keepdims=True)

    @pl.when(j == pl.num_programs(2) - 1)
    def _():
        out_ref[0, 0] = jnp.sum(acc_ref[...], axis=1)


# --------------------------------------------------------------------------- drivers


def _dice_sums_dense(p2d, t2d, rowm, *, cast_t, block_bytes, vmem_limit):
    """p2d, t2d: (N, D); rowm: (N, 1) selection mask.  Returns (3,) f32 sums."""
    n, d = p2d.shape
    item = max(p2d.dtype.itemsize, t2d.dtype.itemsize)
    block_elems = max(block_bytes // item, 8 * 128)

    if _round_up(n, 8) * 128 <= block_elems and n <= _MAX_ROW_TILE:
        tile_n = n
    else:
        cap_rows = min(_MAX_ROW_TILE, max(8, _round_down(block_elems // 128, 8)))
        # TODO(synk): a huge N with no small multiple-of-8 divisor falls back to narrow row tiles.
        tile_n = _pick_tile(n, 8, cap_rows) or _pick_tile(n, 1, cap_rows) or n
    lane_budget = min(_LANE_CAP,
                      max(128, _round_down(block_elems // _round_up(tile_n, 8), 128)))
    tile_d, nb = _d_tiling(d, lane_budget)
    g0 = n // tile_n
    nsplit, gd, clamp = _split_d(g0, nb)
    needs_mask = clamp or (d % tile_d != 0)
    groups, rem = divmod(tile_n, 8)

    def dmap(s, i, j):
        b = s * gd + j
        if clamp:
            b = jnp.minimum(b, nb - 1)       # fully-OOB blocks re-read the last block (masked)
        return (i, b)

    kernel = functools.partial(_dice_dense_kernel, d_total=d, tile_d=tile_d, gd=gd,
                               needs_mask=needs_mask, groups=groups, rem=rem,
                               cast_t=cast_t)
    partials = pl.pallas_call(
        kernel,
        out_shape=jax.ShapeDtypeStruct((nsplit, g0, 3, tile_d), jnp.float32),
        grid_spec=pltpu.PrefetchScalarGridSpec(
            num_scalar_prefetch=0,
            grid=(nsplit, g0, gd),
            in_specs=[
                pl.BlockSpec((tile_n, tile_d), dmap),
                pl.BlockSpec((tile_n, tile_d), dmap),
                pl.BlockSpec((tile_n, 1), lambda s, i, j: (i, 0)),
            ],
            out_specs=pl.BlockSpec((1, 1, 3, tile_d), lambda s, i, j: (s, i, 0, 0)),
            scratch_shapes=[pltpu.VMEM((3, 8, tile_d), jnp.float32)],
        ),
        compiler_params=pltpu.CompilerParams(
            dimension_semantics=("parallel", "parallel", "arbitrary"),
            vmem_limit_bytes=vmem_limit,
        ),
    )(p2d, t2d, rowm)
    return partials.sum(axis=(0, 1, 3))


def _dice_sums_from_labels(p3, labels3, ids, sel, *, block_bytes, vmem_limit):
    """p3: (B, C, D) float; labels3: (B, 1, D) int32; ids, sel: (C, 1).

    Returns (3,) f32: [sum(p*t), sum(p^2), sum(t^2)] with t = onehot(labels) masked by sel,
    without ever materializing the one-hot target.
    """
    b, c, d = p3.shape
    item = p3.dtype.itemsize
    block_elems = max(block_bytes // item, 8 * 128)
    lane_budget = min(_LANE_CAP,
                      max(128, _round_down(block_elems // _round_up(c, 8), 128)))
    tile_d, nb = _d_tiling(d, lane_budget)
    nsplit, gd, clamp = _split_d(b, nb)
    needs_mask = clamp or (d % tile_d != 0)
    groups, rem = divmod(c, 8)

    def dmap(s, i, j):
        bidx = s * gd + j
        if clamp:
            bidx = jnp.minimum(bidx, nb - 1)
        return (i, 0, bidx)

    kernel = functools.partial(_dice_label_kernel, d_total=d, tile_d=tile_d, gd=gd,
                               needs_mask=needs_mask, groups=groups, rem=rem)
    partials = pl.pallas_call(
        kernel,
        out_shape=jax.ShapeDtypeStruct((nsplit, b, 3, tile_d), jnp.float32),
        grid_spec=pltpu.PrefetchScalarGridSpec(
            num_scalar_prefetch=0,
            grid=(nsplit, b, gd),
            in_specs=[
                pl.BlockSpec((1, c, tile_d), dmap),
                pl.BlockSpec((1, 1, tile_d), dmap),
                pl.BlockSpec((c, 1), lambda s, i, j: (0, 0)),
                pl.BlockSpec((c, 1), lambda s, i, j: (0, 0)),
            ],
            out_specs=pl.BlockSpec((1, 1, 3, tile_d), lambda s, i, j: (s, i, 0, 0)),
            scratch_shapes=[pltpu.VMEM((3, 8, tile_d), jnp.float32)],
        ),
        compiler_params=pltpu.CompilerParams(
            dimension_semantics=("parallel", "parallel", "arbitrary"),
            vmem_limit_bytes=vmem_limit,
        ),
    )(p3, labels3, ids, sel)
    return partials.sum(axis=(0, 1, 3))


# --------------------------------------------------------------------------- wrapper


def soft_dice_loss(y_pred, y_true, smooth=1.0, reduction="mean", ignore_index=(),
                   *, _block_bytes=None):
    """JAX/Pallas equivalent of SoftDiceLoss.forward.

    y_pred: (B, C, H, W) float
    y_true: (B, H, W) integer labels, or (B, C, H, W) targets (cast to int as torch does)
    """
    assert isinstance(ignore_index, (list, tuple)), "ignore_index must be list"
    bsz, nc, h, w = y_pred.shape
    d = h * w

    keep = set(range(nc)) - set(ignore_index)
    sel = jnp.asarray([[1.0 if ch in keep else 0.0] for ch in range(nc)], jnp.float32)

    block_bytes, vmem_limit = _hw_budget()
    if _block_bytes is not None:
        block_bytes = _block_bytes

    if y_true.ndim == 3:
        # Fused one-hot path: the (B, C, H, W) target never touches HBM.
        labels = y_true if y_true.dtype == jnp.int32 else y_true.astype(jnp.int32)
        ids = jnp.arange(nc, dtype=jnp.int32).reshape(nc, 1)
        sums = _dice_sums_from_labels(
            y_pred.reshape(bsz, nc, d), labels.reshape(bsz, 1, d), ids, sel,
            block_bytes=block_bytes, vmem_limit=vmem_limit)
    else:
        # Dense path.  PyTorch casts y_true to int64 before the math; the truncating
        # cast is fused into the kernel for the common float dtypes.
        tdt = y_true.dtype
        if tdt == jnp.float32 or tdt == jnp.bfloat16:
            t_arr, cast_t = y_true, True
        elif tdt == jnp.int32:
            t_arr, cast_t = y_true, False
        else:
            # TODO(synk): uncommon target dtypes take one extra wrapper-side cast pass.
            t_arr, cast_t = y_true.astype(jnp.int32), False
        rowm = jnp.tile(sel, (bsz, 1))                     # (B*C, 1) ignore_index mask
        sums = _dice_sums_dense(
            y_pred.reshape(bsz * nc, d), t_arr.reshape(bsz * nc, d), rowm,
            cast_t=cast_t, block_bytes=block_bytes, vmem_limit=vmem_limit)

    inter, p_sq, t_sq = sums[0], sums[1], sums[2]
    dcs = (2.0 * inter + smooth) / (p_sq + t_sq + smooth)
    loss = 1.0 - dcs                # scalar, exactly as in the PyTorch module

    if reduction == "none":
        return loss
    elif reduction == "mean":
        return jnp.mean(loss)
    elif reduction == "sum":
        return jnp.sum(loss)
    else:
        raise RuntimeError


if __name__ == "__main__":
    key = jax.random.PRNGKey(0)
    k1, k2, k3, k4 = jax.random.split(key, 4)

    def ref_loss(yp, yt, smooth=1.0, ignore_index=()):
        bs, nc = yp.shape[0], yp.shape[1]
        if yt.ndim == 3:
            yt4 = jax.nn.one_hot(yt.astype(jnp.int32), nc, axis=1, dtype=jnp.float32)
        else:
            yt4 = yt.astype(jnp.int32).astype(jnp.float32)
        idx = jnp.asarray([c for c in range(nc) if c not in set(ignore_index)], jnp.int32)
        p = jnp.take(yp.astype(jnp.float32), idx, axis=1).reshape(bs, -1)
        t = jnp.take(yt4, idx, axis=1).reshape(bs, -1)
        dcs = ((2.0 * p * t).sum() + smooth) / ((p ** 2).sum() + (t ** 2).sum() + smooth)
        return 1.0 - dcs

    checks = []

    # 1) integer labels -> fused one-hot kernel (C=4: class-remainder path).
    B, C, H, W = 2, 4, 16, 16
    y_pred = jax.nn.softmax(jax.random.normal(k1, (B, C, H, W), jnp.float32), axis=1)
    y_true = jax.random.randint(k2, (B, H, W), 0, C, dtype=jnp.int32)
    checks.append((soft_dice_loss(y_pred, y_true), ref_loss(y_pred, y_true), 1e-5))

    # 2) integer labels with an ignored class (in-kernel selection mask, no HBM gather).
    checks.append((soft_dice_loss(y_pred, y_true, ignore_index=[2]),
                   ref_loss(y_pred, y_true, ignore_index=[2]), 1e-5))

    # 3) dense float targets with non 0/1 values -> in-kernel truncating int cast.
    y_dense = jax.nn.one_hot(y_true, C, axis=1, dtype=jnp.float32) * 1.7 + 0.2
    checks.append((soft_dice_loss(y_pred, y_dense, ignore_index=[1]),
                   ref_loss(y_pred, y_dense, ignore_index=[1]), 1e-5))

    # 4) dense int32 targets (no cast needed inside the kernel).
    y_int = jax.nn.one_hot(y_true, C, axis=1, dtype=jnp.int32)
    checks.append((soft_dice_loss(y_pred, y_int), ref_loss(y_pred, y_int), 1e-5))

    # 5) bf16 predictions (byte-based tiling + in-kernel upcast).
    checks.append((soft_dice_loss(y_pred.astype(jnp.bfloat16), y_true),
                   ref_loss(y_pred.astype(jnp.bfloat16), y_true), 2e-2))

    # 6) small forced blocks: multi-step accumulation along D.
    checks.append((soft_dice_loss(y_pred, y_true, _block_bytes=4096),
                   ref_loss(y_pred, y_true), 1e-5))

    # 7) ragged spatial dims (H*W % 128 != 0) + small blocks: in-kernel lane mask,
    #    2-way parallel D split (B=1), and the 8-class group loop.
    yp2 = jax.nn.softmax(jax.random.normal(k3, (1, 8, 15, 15), jnp.float32), axis=1)
    yt2 = jax.random.randint(k4, (1, 15, 15), 0, 8, dtype=jnp.int32)
    checks.append((soft_dice_loss(yp2, yt2, _block_bytes=4096),
                   ref_loss(yp2, yt2), 1e-5))

    # 8) dense path: ragged D with an OOB-block clamp and a <8 row remainder.
    yp3 = jax.nn.softmax(jax.random.normal(k3, (2, 3, 16, 20), jnp.float32), axis=1)
    yt3 = jax.nn.one_hot(jax.random.randint(k4, (2, 16, 20), 0, 3, dtype=jnp.int32),
                         3, axis=1, dtype=jnp.float32)
    checks.append((soft_dice_loss(yp3, yt3, ignore_index=[0], _block_bytes=4096),
                   ref_loss(yp3, yt3, ignore_index=[0]), 1e-5))

    checks = jax.block_until_ready(checks)
    for got, want, tol in checks:
        assert jnp.allclose(got, want, rtol=tol, atol=tol), (got, want)

    print("KERNEL_OK")
</pallas_src>

<mosaic_0001>
module attributes {stable_mosaic.version = 11 : i64} {
  func.func @_dice_label_kernel(%arg0: i32, %arg1: i32, %arg2: i32, %arg3: memref<1x4x256xf32, #tpu.memory_space<vmem>>, %arg4: memref<1x1x256xi32, #tpu.memory_space<vmem>>, %arg5: memref<4x1xi32, #tpu.memory_space<vmem>>, %arg6: memref<4x1xf32, #tpu.memory_space<vmem>>, %arg7: memref<1x1x3x256xf32, #tpu.memory_space<vmem>>, %arg8: memref<3x8x256xf32, #tpu.memory_space<vmem>>) attributes {dimension_semantics = [#tpu.dimension_semantics<parallel>, #tpu.dimension_semantics<parallel>, #tpu.dimension_semantics<arbitrary>], iteration_bounds = array<i64: 1, 2, 1>, scalar_prefetch = 0 : i64, scratch_operands = 1 : i64, tpu.core_type = #tpu.core_type<tc>, window_params = [{transform_indices = @transform_0, window_bounds = array<i64: 1, 4, 256>}, {transform_indices = @transform_1, window_bounds = array<i64: 1, 1, 256>}, {pipeline_mode = #tpu.pipeline_mode<synchronous>, transform_indices = @transform_2, window_bounds = array<i64: 4, 1>}, {pipeline_mode = #tpu.pipeline_mode<synchronous>, transform_indices = @transform_3, window_bounds = array<i64: 4, 1>}, {transform_indices = @transform_4, window_bounds = array<i64: 1, 1, 3, 256>}]} {
    %c0_i32 = arith.constant 0 : i32
    %0 = arith.cmpi eq, %arg2, %c0_i32 : i32
    %1 = arith.extui %0 : i1 to i32
    %c0_i32_0 = arith.constant 0 : i32
    %2 = arith.cmpi ne, %1, %c0_i32_0 : i32
    scf.if %2 {
      %cst_30 = arith.constant 0.000000e+00 : f32
      %47 = vector.broadcast %cst_30 : f32 to vector<3x8x256xf32>
      %c0_31 = arith.constant 0 : index
      %c0_32 = arith.constant 0 : index
      %c0_33 = arith.constant 0 : index
      %48 = vector.load %arg8[%c0_31, %c0_32, %c0_33] : memref<3x8x256xf32, #tpu.memory_space<vmem>>, vector<3x8x256xf32>
      tpu.vector_store %arg8[%c0_31, %c0_32, %c0_33], %47 {strides = array<i32>} : memref<3x8x256xf32, #tpu.memory_space<vmem>>, vector<3x8x256xf32>,
    } else {
    }
    %c0 = arith.constant 0 : index
    %c0_1 = arith.constant 0 : index
    %c0_2 = arith.constant 0 : index
    %3 = vector.load %arg4[%c0, %c0_1, %c0_2] : memref<1x1x256xi32, #tpu.memory_space<vmem>>, vector<1x1x256xi32>
    %4 = vector.shape_cast %3 : vector<1x1x256xi32> to vector<1x256xi32>
    %c0_3 = arith.constant 0 : index
    %c0_4 = arith.constant 0 : index
    %c0_5 = arith.constant 0 : index
    %5 = vector.load %arg3[%c0_3, %c0_4, %c0_5] : memref<1x4x256xf32, #tpu.memory_space<vmem>>, vector<1x4x256xf32>
    %6 = vector.shape_cast %5 : vector<1x4x256xf32> to vector<4x256xf32>
    %c0_6 = arith.constant 0 : index
    %c0_7 = arith.constant 0 : index
    %7 = vector.load %arg5[%c0_6, %c0_7] : memref<4x1xi32, #tpu.memory_space<vmem>>, vector<4x1xi32>
    %c0_8 = arith.constant 0 : index
    %c0_9 = arith.constant 0 : index
    %8 = vector.load %arg6[%c0_8, %c0_9] : memref<4x1xf32, #tpu.memory_space<vmem>>, vector<4x1xf32>
    %9 = vector.broadcast %4 : vector<1x256xi32> to vector<4x256xi32>
    %10 = vector.broadcast %7 : vector<4x1xi32> to vector<4x256xi32>
    %11 = arith.cmpi eq, %9, %10 : vector<4x256xi32>
    %12 = arith.extui %11 : vector<4x256xi1> to vector<4x256xi32>
    %13 = arith.sitofp %12 : vector<4x256xi32> to vector<4x256xf32>
    %14 = vector.broadcast %8 : vector<4x1xf32> to vector<4x256xf32>
    %15 = arith.mulf %13, %14 : vector<4x256xf32>
    %16 = vector.broadcast %8 : vector<4x1xf32> to vector<4x256xf32>
    %17 = arith.mulf %6, %16 : vector<4x256xf32>
    %18 = arith.mulf %17, %15 : vector<4x256xf32>
    %19 = arith.mulf %17, %17 : vector<4x256xf32>
    %c0_10 = arith.constant 0 : index
    %c0_11 = arith.constant 0 : index
    %c0_12 = arith.constant 0 : index
    %20 = vector.load %arg8[%c0_10, %c0_11, %c0_12] : memref<3x8x256xf32, #tpu.memory_space<vmem>>, vector<1x1x256xf32>
    %21 = vector.shape_cast %20 : vector<1x1x256xf32> to vector<1x256xf32>
    %cst = arith.constant dense<0.000000e+00> : vector<256xf32>
    %22 = vector.multi_reduction <add>, %18, %cst [0] : vector<4x256xf32> to vector<256xf32>
    %23 = vector.shape_cast %22 : vector<256xf32> to vector<1x256xf32>
    %24 = arith.addf %21, %23 : vector<1x256xf32>
    %c0_13 = arith.constant 0 : index
    %c0_14 = arith.constant 0 : index
    %c0_15 = arith.constant 0 : index
    %25 = vector.load %arg8[%c0_13, %c0_14, %c0_15] : memref<3x8x256xf32, #tpu.memory_space<vmem>>, vector<1x1x256xf32>
    %26 = vector.shape_cast %25 : vector<1x1x256xf32> to vector<1x256xf32>
    %27 = vector.shape_cast %24 : vector<1x256xf32> to vector<1x1x256xf32>
    tpu.vector_store %arg8[%c0_13, %c0_14, %c0_15], %27 {strides = array<i32>} : memref<3x8x256xf32, #tpu.memory_space<vmem>>, vector<1x1x256xf32>,
    %c1 = arith.constant 1 : index
    %c0_16 = arith.constant 0 : index
    %c0_17 = arith.constant 0 : index
    %28 = vector.load %arg8[%c1, %c0_16, %c0_17] : memref<3x8x256xf32, #tpu.memory_space<vmem>>, vector<1x1x256xf32>
    %29 = vector.shape_cast %28 : vector<1x1x256xf32> to vector<1x256xf32>
    %cst_18 = arith.constant dense<0.000000e+00> : vector<256xf32>
    %30 = vector.multi_reduction <add>, %19, %cst_18 [0] : vector<4x256xf32> to vector<256xf32>
    %31 = vector.shape_cast %30 : vector<256xf32> to vector<1x256xf32>
    %32 = arith.addf %29, %31 : vector<1x256xf32>
    %c1_19 = arith.constant 1 : index
    %c0_20 = arith.constant 0 : index
    %c0_21 = arith.constant 0 : index
    %33 = vector.load %arg8[%c1_19, %c0_20, %c0_21] : memref<3x8x256xf32, #tpu.memory_space<vmem>>, vector<1x1x256xf32>
    %34 = vector.shape_cast %33 : vector<1x1x256xf32> to vector<1x256xf32>
    %35 = vector.shape_cast %32 : vector<1x256xf32> to vector<1x1x256xf32>
    tpu.vector_store %arg8[%c1_19, %c0_20, %c0_21], %35 {strides = array<i32>} : memref<3x8x256xf32, #tpu.memory_space<vmem>>, vector<1x1x256xf32>,
    %c2 = arith.constant 2 : index
    %c0_22 = arith.constant 0 : index
    %c0_23 = arith.constant 0 : index
    %36 = vector.load %arg8[%c2, %c0_22, %c0_23] : memref<3x8x256xf32, #tpu.memory_space<vmem>>, vector<1x1x256xf32>
    %37 = vector.shape_cast %36 : vector<1x1x256xf32> to vector<1x256xf32>
    %cst_24 = arith.constant dense<0.000000e+00> : vector<256xf32>
    %38 = vector.multi_reduction <add>, %15, %cst_24 [0] : vector<4x256xf32> to vector<256xf32>
    %39 = vector.shape_cast %38 : vector<256xf32> to vector<1x256xf32>
    %40 = arith.addf %37, %39 : vector<1x256xf32>
    %c2_25 = arith.constant 2 : index
    %c0_26 = arith.constant 0 : index
    %c0_27 = arith.constant 0 : index
    %41 = vector.load %arg8[%c2_25, %c0_26, %c0_27] : memref<3x8x256xf32, #tpu.memory_space<vmem>>, vector<1x1x256xf32>
    %42 = vector.shape_cast %41 : vector<1x1x256xf32> to vector<1x256xf32>
    %43 = vector.shape_cast %40 : vector<1x256xf32> to vector<1x1x256xf32>
    tpu.vector_store %arg8[%c2_25, %c0_26, %c0_27], %43 {strides = array<i32>} : memref<3x8x256xf32, #tpu.memory_space<vmem>>, vector<1x1x256xf32>,
    %c0_i32_28 = arith.constant 0 : i32
    %44 = arith.cmpi eq, %arg2, %c0_i32_28 : i32
    %45 = arith.extui %44 : i1 to i32
    %c0_i32_29 = arith.constant 0 : i32
    %46 = arith.cmpi ne, %45, %c0_i32_29 : i32
    scf.if %46 {
      %c0_30 = arith.constant 0 : index
      %c0_31 = arith.constant 0 : index
      %c0_32 = arith.constant 0 : index
      %47 = vector.load %arg8[%c0_30, %c0_31, %c0_32] : memref<3x8x256xf32, #tpu.memory_space<vmem>>, vector<3x8x256xf32>
      %cst_33 = arith.constant dense<0.000000e+00> : vector<3x256xf32>
      %48 = vector.multi_reduction <add>, %47, %cst_33 [1] : vector<3x8x256xf32> to vector<3x256xf32>
      %c0_34 = arith.constant 0 : index
      %c0_35 = arith.constant 0 : index
      %c0_36 = arith.constant 0 : index
      %c0_37 = arith.constant 0 : index
      %49 = vector.load %arg7[%c0_34, %c0_35, %c0_36, %c0_37] : memref<1x1x3x256xf32, #tpu.memory_space<vmem>>, vector<1x1x3x256xf32>
      %50 = vector.shape_cast %49 : vector<1x1x3x256xf32> to vector<3x256xf32>
      %51 = vector.shape_cast %48 : vector<3x256xf32> to vector<1x1x3x256xf32>
      tpu.vector_store %arg7[%c0_34, %c0_35, %c0_36, %c0_37], %51 {strides = array<i32>} : memref<1x1x3x256xf32, #tpu.memory_space<vmem>>, vector<1x1x3x256xf32>,
    } else {
    }
    return
  }
  func.func @transform_0(%arg0: i32, %arg1: i32, %arg2: i32) -> (i32, i32, i32) {
    %c1_i32 = arith.constant 1 : i32
    %0 = arith.muli %arg0, %c1_i32 : i32
    %1 = arith.addi %0, %arg2 : i32
    %c0_i32 = arith.constant 0 : i32
    %c0_i32_0 = arith.constant 0 : i32
    return %arg1, %c0_i32, %1 : i32, i32, i32
  }
  func.func @transform_1(%arg0: i32, %arg1: i32, %arg2: i32) -> (i32, i32, i32) {
    %c1_i32 = arith.constant 1 : i32
    %0 = arith.muli %arg0, %c1_i32 : i32
    %1 = arith.addi %0, %arg2 : i32
    %c0_i32 = arith.constant 0 : i32
    %c0_i32_0 = arith.constant 0 : i32
    return %arg1, %c0_i32, %1 : i32, i32, i32
  }
  func.func @transform_2(%arg0: i32, %arg1: i32, %arg2: i32) -> (i32, i32) {
    %c0_i32 = arith.constant 0 : i32
    %c0_i32_0 = arith.constant 0 : i32
    %c0_i32_1 = arith.constant 0 : i32
    return %c0_i32, %c0_i32_0 : i32, i32
  }
  func.func @transform_3(%arg0: i32, %arg1: i32, %arg2: i32) -> (i32, i32) {
    %c0_i32 = arith.constant 0 : i32
    %c0_i32_0 = arith.constant 0 : i32
    %c0_i32_1 = arith.constant 0 : i32
    return %c0_i32, %c0_i32_0 : i32, i32
  }
  func.func @transform_4(%arg0: i32, %arg1: i32, %arg2: i32) -> (i32, i32, i32, i32) {
    %c0_i32 = arith.constant 0 : i32
    %c0_i32_0 = arith.constant 0 : i32
    %c0_i32_1 = arith.constant 0 : i32
    return %arg0, %arg1, %c0_i32, %c0_i32_0 : i32, i32, i32, i32
  }
}

</mosaic_0001>

<llo_original>
// kernel: tpu_custom_call.1
$region0: #{tpu_custom_call.1}
  #allocation0 [shape = 'u32[]', space=smem, size = 0x4, offset = 0x4, fixed_abs, tag = 'smem constant byte address 0x4 - core index']
  #allocation1 [shape = 'u32[144,128]{1,0:T(1,128)}', space=vmem, size = 0x12000, scoped, tag = 'internal scratch']
  #allocation2 [shape = 'f32[3,8,256]{2,1,0:T(8,128)}', space=vmem, size = 0x6000, scoped, tag = 'scratch operand']
  %s0 = inlined_call_operand.hbm [shape: f32[2,4,256], index: 0, kind: input, shape index: {}]
  %s1 = inlined_call_operand.vmem [shape: s32[2,1,256], index: 1, kind: input, shape index: {}]
  %s2 = inlined_call_operand.vmem [shape: s32[4,1], index: 2, kind: input, shape index: {}]
  %s3 = inlined_call_operand.vmem [shape: f32[4,1], index: 3, kind: input, shape index: {}]
  %s4 = inlined_call_operand.vmem [shape: f32[1,2,3,256], index: 4, kind: output, shape index: {}]
  %s5 = sld [smem:[#allocation0]]
  $region61: #{tpu_custom_call.1} parent=0
    _
  %s7 = ssub.s32 1, %s5
  %s8 = scalar_select 0, %s7, %s5
  $region1: #{tpu_custom_call.1} parent=0
    #allocation3 [shape = 'u8[8192]{0}', space=vmem, size = 0x2000, scoped, tag = 'input window, operand 0']
    #allocation4 [shape = 's32[2]{0}', space=sflag, size = 0x8, scoped, tag = 'scoped memory for tpu_custom_call.1']
    %9 = vsyncpa [#allocation4], 0
    %s10 = scalar_lea.sflag [#allocation4], 1
    %11 = vsyncpa %s10, 0
    loop: start=0, step=1, limit=4
    $region2: #{tpu_custom_call.1} parent=1 // loop_pre_header
      _
    $region3: #{tpu_custom_call.1} parent=1 // loop_header
      %s13 = sphi 0, %s17
      %p14 = scmp.ge.s32.totalorder %s13, 4
      %s20 = sphi 0, %s39
      %s21 = sphi 0, %s35
      %s22 = sphi 0, %s31
      %s23 = sphi 0, %s20
      %s24 = sphi 0, %s21
      %s25 = sphi 0, %s22
      %s26 = sphi 0, %s23
      %s27 = sphi 0, %s24
      %s28 = sphi 0, %s25
      %s46 = sphi 0, %s48
      %s49 = sphi 0, %s46
      %s50 = sphi 0, %s49
      %s66 = sphi 0, %s50
      %s76 = sphi 0, %s78
      %s79 = sphi 0, %s76
      %s80 = sphi 0, %s79
      %s96 = sphi 0, %s80
      %s100 = sphi 0, %s100
      %s102 = sphi 0, %s100
      %s103 = sphi 0, %s102
      %s117 = sphi 0, %s103
      %s121 = sphi 0, %s121
      %s123 = sphi 0, %s121
      %s124 = sphi 0, %s123
      %s138 = sphi 0, %s124
      %s146 = sphi 0, %s148
      %s149 = sphi 0, %s146
      %s150 = sphi 0, %s149
      %s166 = sphi 0, %s150
    $region4: #{tpu_custom_call.1} parent=1 // loop_header_branch
      %16 = sbr.rel (%p14) target = $region8
    $region5: #{tpu_custom_call.1} parent=1 // loop_body
      %s18 = ssub.s32 %s13, 1
      %s19 = ssub.s32 %s13, 2
      %s29 = sadd.s32 1, %s22
      %p30 = scmp.ge.s32.totalorder %s29, 1
      %s31 = scalar_select %p30, 0, %s29
      %s32 = sadd.s32 1, %s21
      %s33 = scalar_select %p30, %s32, %s21
      %p34 = scmp.ge.s32.totalorder %s33, 2
      %s35 = scalar_select %p34, 0, %s33
      %s36 = sadd.s32 1, %s20
      %s37 = scalar_select %p34, %s36, %s20
      %p38 = scmp.ge.s32.totalorder %s37, 1
      %s39 = scalar_select %p38, 0, %s37
      %s40 = sadd.s32 %s20, %s22
      %s41 = sadd.s32 %s39, %s31
      %s42 = ssub.s32 %s21, %s35
      %s43 = ssub.s32 %s40, %s41
      %s44 = sor.u32 %s42, %s43
      %p45 = scmp.eq.s32.totalorder %s44, 0
      %s47 = sadd.s32 %s46, 1
      %s48 = scalar_select %p45, %s46, %s47
      %p51 = pneg %p45
      %p52 = scmp.eq.s32.totalorder %s13, 1
      %p53 = por %p51, %p52
      %p54 = scmp.ne.s32.totalorder %s46, %s49
      %p55 = scmp.eq.s32.totalorder %s13, 0
      %p56 = por %p54, %p55
      %p57 = scmp.ne.s32.totalorder %s46, %s49
      %p58 = scmp.eq.s32.totalorder %s18, 1
      %p59 = por %p57, %p58
      %p60 = scmp.ne.s32.totalorder %s49, %s50
      %p61 = scmp.eq.s32.totalorder %s18, 0
      %p62 = por %p60, %p61
      %p63 = scmp.ne.s32.totalorder %s49, %s50
      %p64 = scmp.eq.s32.totalorder %s19, 1
      %p65 = por %p63, %p64
      %p67 = scmp.ne.s32.totalorder %s50, %s66
      %p68 = scmp.eq.s32.totalorder %s19, 0
      %p69 = por %p67, %p68
      %s70 = sadd.s32 %s20, %s22
      %s71 = sadd.s32 %s39, %s31
      %s72 = ssub.s32 %s21, %s35
      %s73 = ssub.s32 %s70, %s71
      %s74 = sor.u32 %s72, %s73
      %p75 = scmp.eq.s32.totalorder %s74, 0
      %s77 = sadd.s32 %s76, 1
      %s78 = scalar_select %p75, %s76, %s77
      %p81 = pneg %p75
      %p82 = scmp.eq.s32.totalorder %s13, 1
      %p83 = por %p81, %p82
      %p84 = scmp.ne.s32.totalorder %s76, %s79
      %p85 = scmp.eq.s32.totalorder %s13, 0
      %p86 = por %p84, %p85
      %p87 = scmp.ne.s32.totalorder %s76, %s79
      %p88 = scmp.eq.s32.totalorder %s18, 1
      %p89 = por %p87, %p88
      %p90 = scmp.ne.s32.totalorder %s79, %s80
      %p91 = scmp.eq.s32.totalorder %s18, 0
      %p92 = por %p90, %p91
      %p93 = scmp.ne.s32.totalorder %s79, %s80
      %p94 = scmp.eq.s32.totalorder %s19, 1
      %p95 = por %p93, %p94
      %p97 = scmp.ne.s32.totalorder %s80, %s96
      %p98 = scmp.eq.s32.totalorder %s19, 0
      %p99 = por %p97, %p98
      %s101 = sadd.s32 %s100, 1
      %p104 = scmp.eq.s32.totalorder %s13, 1
      %p105 = scmp.ne.s32.totalorder %s100, %s102
      %p106 = scmp.eq.s32.totalorder %s13, 0
      %p107 = por %p105, %p106
      %p108 = scmp.ne.s32.totalorder %s100, %s102
      %p109 = scmp.eq.s32.totalorder %s18, 1
      %p110 = por %p108, %p109
      %p111 = scmp.ne.s32.totalorder %s102, %s103
      %p112 = scmp.eq.s32.totalorder %s18, 0
      %p113 = por %p111, %p112
      %p114 = scmp.ne.s32.totalorder %s102, %s103
      %p115 = scmp.eq.s32.totalorder %s19, 1
      %p116 = por %p114, %p115
      %p118 = scmp.ne.s32.totalorder %s103, %s117
      %p119 = scmp.eq.s32.totalorder %s19, 0
      %p120 = por %p118, %p119
      %s122 = sadd.s32 %s121, 1
      %p125 = scmp.eq.s32.totalorder %s13, 1
      %p126 = scmp.ne.s32.totalorder %s121, %s123
      %p127 = scmp.eq.s32.totalorder %s13, 0
      %p128 = por %p126, %p127
      %p129 = scmp.ne.s32.totalorder %s121, %s123
      %p130 = scmp.eq.s32.totalorder %s18, 1
      %p131 = por %p129, %p130
      %p132 = scmp.ne.s32.totalorder %s123, %s124
      %p133 = scmp.eq.s32.totalorder %s18, 0
      %p134 = por %p132, %p133
      %p135 = scmp.ne.s32.totalorder %s123, %s124
      %p136 = scmp.eq.s32.totalorder %s19, 1
      %p137 = por %p135, %p136
      %p139 = scmp.ne.s32.totalorder %s124, %s138
      %p140 = scmp.eq.s32.totalorder %s19, 0
      %p141 = por %p139, %p140
      %s142 = ssub.s32 %s20, %s39
      %s143 = ssub.s32 %s21, %s35
      %s144 = sor.u32 %s142, %s143
      %p145 = scmp.eq.s32.totalorder %s144, 0
      %s147 = sadd.s32 %s146, 1
      %s148 = scalar_select %p145, %s146, %s147
      %p151 = pneg %p145
      %p152 = scmp.eq.s32.totalorder %s13, 1
      %p153 = por %p151, %p152
      %p154 = scmp.ne.s32.totalorder %s146, %s149
      %p155 = scmp.eq.s32.totalorder %s13, 0
      %p156 = por %p154, %p155
      %p157 = scmp.ne.s32.totalorder %s146, %s149
      %p158 = scmp.eq.s32.totalorder %s18, 1
      %p159 = por %p157, %p158
      %p160 = scmp.ne.s32.totalorder %s149, %s150
      %p161 = scmp.eq.s32.totalorder %s18, 0
      %p162 = por %p160, %p161
      %p163 = scmp.ne.s32.totalorder %s149, %s150
      %p164 = scmp.eq.s32.totalorder %s19, 1
      %p165 = por %p163, %p164
      %p167 = scmp.ne.s32.totalorder %s150, %s166
      %p168 = scmp.eq.s32.totalorder %s19, 0
      %p169 = por %p167, %p168
      %p170 = scmp.le.s32.totalorder 1, %s13
      %p171 = scmp.lt.s32.totalorder %s13, 3
      %p172 = pnand %p170, %p171
      %p173 = pneg %p172
      // Predicated region
      $region9: #{tpu_custom_call.1} parent=5 // pred_check
        _
      $region10: #{tpu_custom_call.1} parent=5 // pred_check_branch
        %175 = sbr.rel (%p172) target = $region12
      $region11: #{tpu_custom_call.1} parent=5 // pred_region
        %s176 = ssub.s32 %s13, 1
        // Predicated region
        $region13: #{tpu_custom_call.1} parent=11 // pred_check
          %p177 = pneg %p113
        $region14: #{tpu_custom_call.1} parent=11 // pred_check_branch
          %179 = sbr.rel (%p177) target = $region16
        $region15: #{tpu_custom_call.1} parent=11 // pred_region
          _
        $region16: #{tpu_custom_call.1} parent=11 // pred_fallthru
          _
        // Predicated region
        $region17: #{tpu_custom_call.1} parent=11 // pred_check
          %p180 = pneg %p134
        $region18: #{tpu_custom_call.1} parent=11 // pred_check_branch
          %182 = sbr.rel (%p180) target = $region20
        $region19: #{tpu_custom_call.1} parent=11 // pred_region
          _
        $region20: #{tpu_custom_call.1} parent=11 // pred_fallthru
          _
      $region12: #{tpu_custom_call.1} parent=5 // pred_fallthru
        _
      %p183 = scmp.lt.s32.totalorder %s13, 2
      // Predicated region
      $region21: #{tpu_custom_call.1} parent=5 // pred_check
        %p184 = pneg %p183
      $region22: #{tpu_custom_call.1} parent=5 // pred_check_branch
        %186 = sbr.rel (%p184) target = $region24
      $region23: #{tpu_custom_call.1} parent=5 // pred_region
        // Predicated region
        $region25: #{tpu_custom_call.1} parent=23 // pred_check
          %p187 = pneg %p56
        $region26: #{tpu_custom_call.1} parent=23 // pred_check_branch
          %189 = sbr.rel (%p187) target = $region28
        $region27: #{tpu_custom_call.1} parent=23 // pred_region
          %s190 = sand.u32 %s46, 1
          %s191 = scalar_lea.sflag [#allocation4], %s190
          %s192 = sand.u32 %s46, 1
          %s193 = smul.addr %s192, 8
          %s194 = scalar_lea.vmem [#allocation3], %s193
          %s195 = sadd.s32 %s20, %s22
          %s196 = smul.u32 2, %s195
          %s198 = ssub.s32 128, 128
          %199 = vsyncadd %s191, %s198
          %s200 = smul.addr %s21, 2
          %s201 = sadd.s32 %s196, %s200
          %s202 = smul.addr %s201, 64
          %s203 = scalar_lea.hbm %s0, %s202
          %s205 = sshll.u32 %s194, 4
          %s206 = int_to_ptr.vmem [resolvable:$true] %s205
          %208 = dma.hbm_to_vmem [thread:$0]  %s203, 128, %s206, %s191
        $region28: #{tpu_custom_call.1} parent=23 // pred_fallthru
          _
        // Predicated region
        $region29: #{tpu_custom_call.1} parent=23 // pred_check
          %p209 = pneg %p86
        $region30: #{tpu_custom_call.1} parent=23 // pred_check_branch
          %211 = sbr.rel (%p209) target = $region32
        $region31: #{tpu_custom_call.1} parent=23 // pred_region
          %s212 = sadd.s32 %s20, %s22
          %s213 = smul.u32 2, %s212
          %p214 = scmp.lt.s32.totalorder %s21, 1
          %s215 = scalar_select %p214, %s21, 1
          %p216 = scmp.lt.s32.totalorder %s213, 1
          %s217 = scalar_select %p216, %s213, 1
          %s218 = smul.addr %s215, 2
          %s219 = sadd.s32 %s217, %s218
          %s220 = scalar_lea.vmem %s1, %s219
          %s221 = sadd.s32 %s20, %s22
          %s222 = smul.u32 2, %s221
        $region32: #{tpu_custom_call.1} parent=23 // pred_fallthru
          _
      $region24: #{tpu_custom_call.1} parent=5 // pred_fallthru
        _
      %p223 = scmp.le.s32.totalorder 1, %s13
      %p224 = scmp.lt.s32.totalorder %s13, 3
      %p225 = pnand %p223, %p224
      %p226 = pneg %p225
      // Predicated region
      $region33: #{tpu_custom_call.1} parent=5 // pred_check
        _
      $region34: #{tpu_custom_call.1} parent=5 // pred_check_branch
        %228 = sbr.rel (%p225) target = $region36
      $region35: #{tpu_custom_call.1} parent=5 // pred_region
        %s229 = ssub.s32 %s13, 1
        %s230 = sand.u32 %s49, 1
        %s231 = scalar_lea.sflag [#allocation4], %s230
        %s232 = sand.u32 %s49, 1
        %s233 = smul.addr %s232, 8
        %s234 = scalar_lea.vmem [#allocation3], %s233
        // Predicated region
        $region37: #{tpu_custom_call.1} parent=35 // pred_check
          %p235 = pneg %p62
        $region38: #{tpu_custom_call.1} parent=35 // pred_check_branch
          %237 = sbr.rel (%p235) target = $region40
        $region39: #{tpu_custom_call.1} parent=35 // pred_region
          %238 = dma.done %s231, 128
        $region40: #{tpu_custom_call.1} parent=35 // pred_fallthru
          _
        %s239 = sand.u32 %s49, 1
        %s240 = scalar_lea.sflag [#allocation4], %s239
        %s241 = sand.u32 %s49, 1
        %s242 = smul.addr %s241, 8
        %s243 = scalar_lea.vmem [#allocation3], %s242
        %p244 = pneg %p62
        %p245 = pneg %p59
        %s246 = sadd.s32 %s23, %s25
        %s247 = smul.u32 2, %s246
        %p248 = scmp.lt.s32.totalorder %s24, 1
        %s249 = scalar_select %p248, %s24, 1
        %p250 = scmp.lt.s32.totalorder %s247, 1
        %s251 = scalar_select %p250, %s247, 1
        %s252 = smul.addr %s249, 2
        %s253 = sadd.s32 %s251, %s252
        %s254 = scalar_lea.vmem %s1, %s253
        %p255 = pneg %p92
        %p256 = pneg %p89
        %p257 = pneg %p113
        %p258 = pneg %p110
        %p259 = pneg %p134
        %p260 = pneg %p131
        %p261 = pneg %p162
        %p262 = pneg %p159
        %p263 = scmp.lt.s32.totalorder %s23, 0
        %s264 = scalar_select %p263, %s23, 0
        %p265 = scmp.lt.s32.totalorder %s24, 1
        %s266 = scalar_select %p265, %s24, 1
        %s267 = smul.addr %s266, 2
        %s268 = smul.addr %s264, 4
        %s269 = sadd.s32 %s267, %s268
        %s270 = smul.addr %s269, 4
        %s271 = scalar_lea.vmem %s4, %s270
        %s272 = sadd.s32 %s23, %s25
        %s273 = smul.u32 2, %s272
        %s274 = sadd.s32 %s23, %s25
        %s275 = smul.u32 2, %s274
        %p276 = scmp.lt.s32.totalorder %s24, 1
        %s277 = scalar_select %p276, %s24, 1
        %p278 = scmp.lt.s32.totalorder %s275, 1
        %s279 = scalar_select %p278, %s275, 1
        %s280 = smul.addr %s277, 2
        %s281 = sadd.s32 %s279, %s280
        %s282 = scalar_lea.vmem %s1, %s281
        %s283 = sadd.s32 %s23, %s25
        %s284 = smul.u32 2, %s283
        %p285 = scmp.lt.s32.totalorder %s23, 0
        %s286 = scalar_select %p285, %s23, 0
        %p287 = scmp.lt.s32.totalorder %s24, 1
        %s288 = scalar_select %p287, %s24, 1
        %s289 = smul.addr %s288, 2
        %s290 = smul.addr %s286, 4
        %s291 = sadd.s32 %s289, %s290
        %s292 = smul.addr %s291, 4
        %s293 = scalar_lea.vmem %s4, %s292
        %p294 = scmp.eq.s32.totalorder %s25, 0
        // Predicated region
        $region41: #{tpu_custom_call.1} parent=35 // pred_check
          %p295 = pneg %p294
        $region42: #{tpu_custom_call.1} parent=35 // pred_check_branch
          %297 = sbr.rel (%p295) target = $region44
        $region43: #{tpu_custom_call.1} parent=35 // pred_region
          %298 = vst [vmem:[#allocation2] sm:$0xff] 0.0
          %299 = vst [vmem:[#allocation2 + $0x8] sm:$0xff] 0.0
          %300 = vst [vmem:[#allocation2 + $0x10] sm:$0xff] 0.0
          %301 = vst [vmem:[#allocation2 + $0x18] sm:$0xff] 0.0
          %302 = vst [vmem:[#allocation2 + $0x20] sm:$0xff] 0.0
          %303 = vst [vmem:[#allocation2 + $0x28] sm:$0xff] 0.0
        $region44: #{tpu_custom_call.1} parent=35 // pred_fallthru
          _
        %v304 = vld [vmem:[%s282] sm:$0x3]
        %v305 = vld [vmem:[%s234] sm:$0xff]
        %v306 = vld [vmem:[%s2] sm:$0xf]
        %v307 = vld [vmem:[%s3] sm:$0xf]
        %v308 = vlaneseq
        %v309 = vshrl.u32 %v308, 7
        %v310 = vsub.s32 0, %v309
        %v311 = vrot.slane %v304, %v310
        %v312 = vlaneseq
        %v313 = vshrl.u32 %v312, 7
        %v314 = vsub.s32 1, %v313
        %v315 = vrot.slane %v304, %v314
        %316 = vset.pattern.permute.xlu0 0
        %317 = vperm.xlu0 %316, %v306
        %v318 = vpop.permute.xlu0 %317
        %vm319 = vcmp.eq.s32.totalorder %v311, %v318
        %vm320 = vcmp.eq.s32.totalorder %v315, %v318
        %v321 = vsel %vm319, 1, 0
        %v322 = vsel %vm320, 1, 0
        %v323 = vcvt.s32.f32 %v321
        %v324 = vcvt.s32.f32 %v322
        %326 = vset.pattern.permute.xlu0 0
        %327 = vperm.xlu0 %326, %v307
        %v328 = vpop.permute.xlu0 %327
        %v330 = vmul.f32 %v323, %v328
        %v331 = vmul.f32 %v324, %v328
        %v333 = vunpack.c.l.s4 839922192
        %v334 = vunpack.c.0.s8 %v333
        %v335 = vlaneseq
        %v336 = vshrl.u32 %v335, 7
        %v337 = vsub.s32 %v334, %v336
        %v338 = vrot.slane %v328, %v337
        %v340 = vmul.f32 %v305, %v338
        %v343 = vcombine.low %v330, %v331
        %v345 = vmul.f32 %v340, %v343
        %v346 = vmul.f32 %v340, %v340
        %v347 = vld [vmem:[#allocation2] ss:$8 sm:$0x3]
        %v349 = vcombine.high %v345, %v345
        %vm351 = vcmask 1043456
        %v352 = vsel %vm351, %v345, 0.0
        %v353 = vrot.slane %v352, 4
        %v354 = vadd.f32 %v352, %v353
        %v355 = vrot.slane %v354, 2
        %v356 = vadd.f32 %v354, %v355
        %v357 = vrot.slane %v356, 1
        %v358 = vadd.f32 %v356, %v357
        %v359 = vsel %vm351, %v349, 0.0
        %v360 = vrot.slane %v359, 4
        %v361 = vadd.f32 %v359, %v360
        %v362 = vrot.slane %v361, 2
        %v363 = vadd.f32 %v361, %v362
        %v364 = vrot.slane %v363, 1
        %v365 = vadd.f32 %v363, %v364
        %v368 = vcombine.low %v358, %v365
        %v370 = vunpack.c.l.s4 1966171168
        %v371 = vunpack.c.0.s8 %v370
        %v372 = vlaneseq
        %v373 = vshrl.u32 %v372, 7
        %v374 = vsub.s32 %v371, %v373
        %v375 = vrot.slane %v368, %v374
        %v377 = vunpack.c.l.s4 1966171168
        %v378 = vunpack.c.0.s8 %v377
        %v379 = vlaneseq
        %v380 = vshrl.u32 %v379, 7
        %v381 = vsub.s32 %v378, %v380
        %v382 = vrot.slane %v375, %v381
        %v384 = vadd.f32 %v347, %v382
        %v385 = vlaneseq
        %vm386 = vcmp.ge.s32.totalorder %v385, 0
        %vm387 = vcmp.lt.s32.totalorder %v385, 256
        %vm388 = vmand %vm386, %vm387
        %389 = vst.msk [vmem:[#allocation2] ss:$8 sm:$0x3] %vm388, %v384
        %390 = vst.msk [vmem:[#allocation2] ss:$8 sm:$0x0] %vm388, %v384
        %s391 = scalar_lea.vmem [#allocation2], 16
        %v392 = vld [vmem:[%s391] ss:$8 sm:$0x3]
        %v394 = vcombine.high %v346, %v346
        %v396 = vsel %vm351, %v346, 0.0
        %v397 = vrot.slane %v396, 4
        %v398 = vadd.f32 %v396, %v397
        %v399 = vrot.slane %v398, 2
        %v400 = vadd.f32 %v398, %v399
        %v401 = vrot.slane %v400, 1
        %v402 = vadd.f32 %v400, %v401
        %v403 = vsel %vm351, %v394, 0.0
        %v404 = vrot.slane %v403, 4
        %v405 = vadd.f32 %v403, %v404
        %v406 = vrot.slane %v405, 2
        %v407 = vadd.f32 %v405, %v406
        %v408 = vrot.slane %v407, 1
        %v409 = vadd.f32 %v407, %v408
        %v412 = vcombine.low %v402, %v409
        %v414 = vunpack.c.l.s4 1966171168
        %v415 = vunpack.c.0.s8 %v414
        %v416 = vlaneseq
        %v417 = vshrl.u32 %v416, 7
        %v418 = vsub.s32 %v415, %v417
        %v419 = vrot.slane %v412, %v418
        %v421 = vunpack.c.l.s4 1966171168
        %v422 = vunpack.c.0.s8 %v421
        %v423 = vlaneseq
        %v424 = vshrl.u32 %v423, 7
        %v425 = vsub.s32 %v422, %v424
        %v426 = vrot.slane %v419, %v425
        %v428 = vadd.f32 %v392, %v426
        %429 = vst.msk [vmem:[%s391] ss:$8 sm:$0x3] %vm388, %v428
        %430 = vst.msk [vmem:[%s391] ss:$8 sm:$0x0] %vm388, %v428
        %s431 = scalar_lea.vmem [#allocation2], 32
        %v432 = vld [vmem:[%s431] ss:$8 sm:$0x3]
        %v433 = vsel %vm351, %v330, 0.0
        %v434 = vrot.slane %v433, 4
        %v435 = vadd.f32 %v433, %v434
        %v436 = vrot.slane %v435, 2
        %v437 = vadd.f32 %v435, %v436
        %v438 = vrot.slane %v437, 1
        %v439 = vadd.f32 %v437, %v438
        %v440 = vsel %vm351, %v331, 0.0
        %v441 = vrot.slane %v440, 4
        %v442 = vadd.f32 %v440, %v441
        %v443 = vrot.slane %v442, 2
        %v444 = vadd.f32 %v442, %v443
        %v445 = vrot.slane %v444, 1
        %v446 = vadd.f32 %v444, %v445
        %v449 = vcombine.low %v439, %v446
        %v451 = vunpack.c.l.s4 1966171168
        %v452 = vunpack.c.0.s8 %v451
        %v453 = vlaneseq
        %v454 = vshrl.u32 %v453, 7
        %v455 = vsub.s32 %v452, %v454
        %v456 = vrot.slane %v449, %v455
        %v458 = vunpack.c.l.s4 1966171168
        %v459 = vunpack.c.0.s8 %v458
        %v460 = vlaneseq
        %v461 = vshrl.u32 %v460, 7
        %v462 = vsub.s32 %v459, %v461
        %v463 = vrot.slane %v456, %v462
        %v465 = vadd.f32 %v432, %v463
        %466 = vst.msk [vmem:[%s431] ss:$8 sm:$0x3] %vm388, %v465
        %467 = vst.msk [vmem:[%s431] ss:$8 sm:$0x0] %vm388, %v465
        // Predicated region
        $region45: #{tpu_custom_call.1} parent=35 // pred_check
          %p468 = pneg %p294
        $region46: #{tpu_custom_call.1} parent=35 // pred_check_branch
          %470 = sbr.rel (%p468) target = $region48
        $region47: #{tpu_custom_call.1} parent=35 // pred_region
          %v471 = vld [vmem:[#allocation2] sm:$0xff]
          %v472 = vld [vmem:[#allocation2 + $0x8] sm:$0xff]
          %v473 = vld [vmem:[#allocation2 + $0x10] sm:$0xff]
          %v474 = vld [vmem:[#allocation2 + $0x18] sm:$0xff]
          %v475 = vld [vmem:[#allocation2 + $0x20] sm:$0xff]
          %v476 = vld [vmem:[#allocation2 + $0x28] sm:$0xff]
          %v477 = vrot.slane %v471, 4
          %v478 = vadd.f32 %v471, %v477
          %v479 = vrot.slane %v478, 2
          %v480 = vadd.f32 %v478, %v479
          %v481 = vrot.slane %v480, 1
          %v482 = vadd.f32 %v480, %v481
          %v483 = vrot.slane %v472, 4
          %v484 = vadd.f32 %v472, %v483
          %v485 = vrot.slane %v484, 2
          %v486 = vadd.f32 %v484, %v485
          %v487 = vrot.slane %v486, 1
          %v488 = vadd.f32 %v486, %v487
          %v489 = vrot.slane %v473, 4
          %v490 = vadd.f32 %v473, %v489
          %v491 = vrot.slane %v490, 2
          %v492 = vadd.f32 %v490, %v491
          %v493 = vrot.slane %v492, 1
          %v494 = vadd.f32 %v492, %v493
          %v495 = vrot.slane %v474, 4
          %v496 = vadd.f32 %v474, %v495
          %v497 = vrot.slane %v496, 2
          %v498 = vadd.f32 %v496, %v497
          %v499 = vrot.slane %v498, 1
          %v500 = vadd.f32 %v498, %v499
          %v501 = vrot.slane %v475, 4
          %v502 = vadd.f32 %v475, %v501
          %v503 = vrot.slane %v502, 2
          %v504 = vadd.f32 %v502, %v503
          %v505 = vrot.slane %v504, 1
          %v506 = vadd.f32 %v504, %v505
          %v507 = vrot.slane %v476, 4
          %v508 = vadd.f32 %v476, %v507
          %v509 = vrot.slane %v508, 2
          %v510 = vadd.f32 %v508, %v509
          %v511 = vrot.slane %v510, 1
          %v512 = vadd.f32 %v510, %v511
          %v519 = vcombine.low %v482, %v488
          %v520 = vcombine.low %v494, %v500
          %v521 = vcombine.low %v506, %v512
          %v522 = vrot.slane %v520, 7
          %vm523 = vcmask 1041409
          %v524 = vsel %vm523, %v522, %v519
          %vm525 = vcmask 1045509
          %v526 = vsel %vm525, %v522, %v524
          %v527 = vrot.slane %v521, 6
          %vm528 = vcmask 1042434
          %v529 = vsel %vm528, %v527, %v526
          %vm530 = vcmask 1046534
          %v531 = vsel %vm530, %v527, %v529
          %533 = vst [vmem:[%s293] sm:$0x77] %v531
        $region48: #{tpu_custom_call.1} parent=35 // pred_fallthru
          _
        %p534 = scmp.lt.s32.totalorder %s23, 0
        %s535 = scalar_select %p534, %s23, 0
        %p536 = scmp.lt.s32.totalorder %s24, 1
        %s537 = scalar_select %p536, %s24, 1
        %s538 = smul.addr %s537, 2
        %s539 = smul.addr %s535, 4
        %s540 = sadd.s32 %s538, %s539
        %s541 = smul.addr %s540, 4
        %s542 = scalar_lea.vmem %s4, %s541
        // Predicated region
        $region49: #{tpu_custom_call.1} parent=35 // pred_check
          %p543 = pneg %p159
        $region50: #{tpu_custom_call.1} parent=35 // pred_check_branch
          %545 = sbr.rel (%p543) target = $region52
        $region51: #{tpu_custom_call.1} parent=35 // pred_region
          _
        $region52: #{tpu_custom_call.1} parent=35 // pred_fallthru
          _
      $region36: #{tpu_custom_call.1} parent=5 // pred_fallthru
        _
      %p546 = scmp.le.s32.totalorder 2, %s13
      // Predicated region
      $region53: #{tpu_custom_call.1} parent=5 // pred_check
        %p547 = pneg %p546
      $region54: #{tpu_custom_call.1} parent=5 // pred_check_branch
        %549 = sbr.rel (%p547) target = $region56
      $region55: #{tpu_custom_call.1} parent=5 // pred_region
        %s550 = ssub.s32 %s13, 2
        // Predicated region
        $region57: #{tpu_custom_call.1} parent=55 // pred_check
          %p551 = pneg %p165
        $region58: #{tpu_custom_call.1} parent=55 // pred_check_branch
          %553 = sbr.rel (%p551) target = $region60
        $region59: #{tpu_custom_call.1} parent=55 // pred_region
          %p554 = scmp.lt.s32.totalorder %s26, 0
          %s555 = scalar_select %p554, %s26, 0
          %p556 = scmp.lt.s32.totalorder %s27, 1
          %s557 = scalar_select %p556, %s27, 1
          %s558 = smul.addr %s557, 2
          %s559 = smul.addr %s555, 4
          %s560 = sadd.s32 %s558, %s559
          %s561 = smul.addr %s560, 4
          %s562 = scalar_lea.vmem %s4, %s561
        $region60: #{tpu_custom_call.1} parent=55 // pred_fallthru
          _
      $region56: #{tpu_custom_call.1} parent=5 // pred_fallthru
        _
    $region6: #{tpu_custom_call.1} parent=1 // loop_footer
      %s17 = sadd.s32 1, %s13
    $region7: #{tpu_custom_call.1} parent=1 // loop_footer_branch
      %12 = sbr.rel target = $region3
    $region8: #{tpu_custom_call.1} parent=1 // loop_exit
      _
    %563 = vsyncpa [#allocation4], 1
    %s564 = scalar_lea.sflag [#allocation4], 1
    %565 = vsyncpa %s564, 1

</llo_original>
